<compile_context>
chip_gen: v6e
topology: v6e:2x2x1
jax: 0.10.0
libtpu: 0.0.40
codegen_flags: <defaults>
</compile_context>

<pallas_src>
import jax
import jax.numpy as jnp
from jax.experimental import pallas as pl
from jax.experimental.pallas import tpu as pltpu

_LANE = 128
_SUBLANE = 8


# ----------------------------------------------------------------------------
# Pallas kernel
# ----------------------------------------------------------------------------
def _heaviside_kernel(x_ref, const_ref, out_ref):
    """eps = (tanh(beta*eta) + tanh(beta*(x - eta))) / (tanh(beta*eta) + tanh(beta*(1-eta)))."""
    beta = const_ref[0]
    eta = const_ref[1]
    t_eta = const_ref[2]      # tanh(beta * eta), precomputed host-side
    inv_den = const_ref[3]    # 1 / (tanh(beta*eta) + tanh(beta*(1-eta)))
    out_ref[...] = (t_eta + jnp.tanh(beta * (x_ref[...] - eta))) * inv_den


# ----------------------------------------------------------------------------
# Layout planning + wrapper
# ----------------------------------------------------------------------------
def _cdiv(a, b):
    return (a + b - 1) // b


def _round_up(n, m):
    return _cdiv(n, m) * m


def _plan_layout(n):
    """Pick (rows, cols, tile_r, grid) for a lane-dense 2-D slab of n elements."""
    # Lane-dense column width (multiple of 128); 512 keeps stores unmasked and
    # wide without forcing excessive padding on small inputs.
    cols = 4 * _LANE if n >= 4 * _LANE else _LANE
    rows = _round_up(_cdiv(n, cols), _SUBLANE)

    # Cap block bytes at ~4 MiB (f32): tile_r * cols * 4 <= 4 MiB, 8-aligned.
    max_tile = max(_SUBLANE,
                   ((4 * 1024 * 1024) // (cols * 4)) // _SUBLANE * _SUBLANE)

    if rows > _SUBLANE:
        # Prefer >= 2 grid steps so both v7x TensorCores get work.
        half = _round_up(_cdiv(rows, 2), _SUBLANE)
        tile_r = min(max_tile, half)
    else:
        tile_r = rows

    rows = _round_up(rows, tile_r)   # whole number of tiles: no ragged block
    grid = rows // tile_r
    return rows, cols, tile_r, grid


def heaviside_projection(x, beta, eta, mode="regular"):
    """Pallas equivalent of HeavisideProjection.forward."""
    if mode.lower() == "ste":
        # TODO(synk): mode='ste' dispatches to HeavisideProjectionLayer (custom
        # autograd Function) whose forward is not given in the spec; only the
        # 'regular' mode is implemented here.
        raise NotImplementedError("mode='ste' is not implemented")

    x = jnp.asarray(x)
    orig_shape = x.shape
    orig_dtype = x.dtype if jnp.issubdtype(x.dtype, jnp.floating) else jnp.float32
    x = x.astype(jnp.float32)
    n = int(x.size)
    if n == 0:
        return x.astype(orig_dtype)

    rows, cols, tile_r, grid = _plan_layout(n)

    flat = x.reshape(-1)
    pad = rows * cols - n
    if pad:
        # Padded lanes hold zeros (tanh(0) is finite) and are trimmed below.
        flat = jnp.pad(flat, (0, pad))
    x2d = flat.reshape(rows, cols)

    # Hoist the scalar transcendentals out of the kernel (saves 2 tanh + 1
    # divide per element) and ship them through SMEM.
    beta_f = jnp.asarray(beta, jnp.float32)
    eta_f = jnp.asarray(eta, jnp.float32)
    t_eta = jnp.tanh(beta_f * eta_f)
    inv_den = 1.0 / (t_eta + jnp.tanh(beta_f * (1.0 - eta_f)))
    consts = jnp.stack([beta_f, eta_f, t_eta, inv_den]).astype(jnp.float32)

    # VMEM budget derived from the block sizes: in + out, double-buffered,
    # plus headroom; clamped so it is safe on v7x (64 MiB physical VMEM).
    block_bytes = tile_r * cols * 4
    vmem_limit = min(32 * 1024 * 1024,
                     max(8 * 1024 * 1024, 4 * block_bytes + 4 * 1024 * 1024))

    out = pl.pallas_call(
        _heaviside_kernel,
        out_shape=jax.ShapeDtypeStruct((rows, cols), jnp.float32),
        grid=(grid,),
        in_specs=[
            pl.BlockSpec((tile_r, cols), lambda i: (i, 0)),
            pl.BlockSpec(memory_space=pltpu.MemorySpace.SMEM),
        ],
        out_specs=pl.BlockSpec((tile_r, cols), lambda i: (i, 0)),
        compiler_params=pltpu.CompilerParams(
            dimension_semantics=("parallel",),
            vmem_limit_bytes=vmem_limit,
        ),
    )(x2d, consts)

    return out.reshape(-1)[:n].reshape(orig_shape).astype(orig_dtype)


# ----------------------------------------------------------------------------
# Self-test
# ----------------------------------------------------------------------------
def _ref_heaviside(x, beta, eta):
    return (jnp.tanh(beta * eta) + jnp.tanh(beta * (x - eta))) / (
        jnp.tanh(beta * eta) + jnp.tanh(beta * (1.0 - eta)))


if __name__ == "__main__":
    key = jax.random.PRNGKey(0)

    # Typical use: a density/level-set field in [0, 1].
    x = jax.random.uniform(key, (2, 4, 16, 16), jnp.float32)
    beta, eta = 4.0, 0.5
    y = jax.block_until_ready(heaviside_projection(x, beta, eta))
    assert y.shape == x.shape
    assert jnp.allclose(y, _ref_heaviside(x, beta, eta), atol=1e-5, rtol=1e-5), \
        "heaviside mismatch"

    # Odd, non-aligned shape exercises the padding / repacking path.
    x2 = jax.random.normal(jax.random.PRNGKey(1), (3, 37, 53), jnp.float32)
    beta2, eta2 = 10.0, 0.3
    y2 = jax.block_until_ready(heaviside_projection(x2, beta2, eta2))
    assert y2.shape == x2.shape
    assert jnp.allclose(y2, _ref_heaviside(x2, beta2, eta2), atol=1e-5, rtol=1e-5), \
        "heaviside mismatch (padded path)"

    print("KERNEL_OK")
</pallas_src>

<mosaic_0001>
module attributes {stable_mosaic.version = 11 : i64} {
  func.func @_heaviside_kernel(%arg0: i32, %arg1: memref<8x512xf32, #tpu.memory_space<vmem>>, %arg2: memref<4xf32, #tpu.memory_space<smem>>, %arg3: memref<8x512xf32, #tpu.memory_space<vmem>>) attributes {dimension_semantics = [#tpu.dimension_semantics<parallel>], iteration_bounds = array<i64: 1>, scalar_prefetch = 0 : i64, scratch_operands = 0 : i64, tpu.core_type = #tpu.core_type<tc>, window_params = [{transform_indices = @transform_0, window_bounds = array<i64: 8, 512>}, {transform_indices = @transform_1, window_bounds = array<i64: 4>}, {transform_indices = @transform_2, window_bounds = array<i64: 8, 512>}]} {
    %c0 = arith.constant 0 : index
    %0 = memref.load %arg2[%c0] : memref<4xf32, #tpu.memory_space<smem>>
    %c1 = arith.constant 1 : index
    %1 = memref.load %arg2[%c1] : memref<4xf32, #tpu.memory_space<smem>>
    %c2 = arith.constant 2 : index
    %2 = memref.load %arg2[%c2] : memref<4xf32, #tpu.memory_space<smem>>
    %c3 = arith.constant 3 : index
    %3 = memref.load %arg2[%c3] : memref<4xf32, #tpu.memory_space<smem>>
    %c0_0 = arith.constant 0 : index
    %c0_1 = arith.constant 0 : index
    %4 = vector.load %arg1[%c0_0, %c0_1] : memref<8x512xf32, #tpu.memory_space<vmem>>, vector<8x512xf32>
    %5 = vector.broadcast %1 : f32 to vector<8x512xf32>
    %6 = arith.subf %4, %5 : vector<8x512xf32>
    %7 = vector.broadcast %0 : f32 to vector<8x512xf32>
    %8 = arith.mulf %7, %6 : vector<8x512xf32>
    %9 = math.tanh %8 : vector<8x512xf32>
    %10 = vector.broadcast %2 : f32 to vector<8x512xf32>
    %11 = arith.addf %10, %9 : vector<8x512xf32>
    %12 = vector.broadcast %3 : f32 to vector<8x512xf32>
    %13 = arith.mulf %11, %12 : vector<8x512xf32>
    %c0_2 = arith.constant 0 : index
    %c0_3 = arith.constant 0 : index
    %14 = vector.load %arg3[%c0_2, %c0_3] : memref<8x512xf32, #tpu.memory_space<vmem>>, vector<8x512xf32>
    tpu.vector_store %arg3[%c0_2, %c0_3], %13 {strides = array<i32>} : memref<8x512xf32, #tpu.memory_space<vmem>>, vector<8x512xf32>,
    return
  }
  func.func @transform_0(%arg0: i32) -> (i32, i32) {
    %c0_i32 = arith.constant 0 : i32
    %c0_i32_0 = arith.constant 0 : i32
    return %arg0, %c0_i32 : i32, i32
  }
  func.func @transform_1(%arg0: i32) -> i32 {
    %c0_i32 = arith.constant 0 : i32
    %c0_i32_0 = arith.constant 0 : i32
    return %c0_i32 : i32
  }
  func.func @transform_2(%arg0: i32) -> (i32, i32) {
    %c0_i32 = arith.constant 0 : i32
    %c0_i32_0 = arith.constant 0 : i32
    return %arg0, %c0_i32 : i32, i32
  }
}

</mosaic_0001>

<llo_original>
// kernel: tpu_custom_call.1
$region0: #{tpu_custom_call.1}
  #allocation0 [shape = 'u32[]', space=smem, size = 0x4, offset = 0x4, fixed_abs, tag = 'smem constant byte address 0x4 - core index']
  #allocation1 [shape = 'u32[144,128]{1,0:T(1,128)}', space=vmem, size = 0x12000, scoped, tag = 'internal scratch']
  %s0 = inlined_call_operand.hbm [shape: f32[8,512], index: 0, kind: input, shape index: {}]
  %s1 = inlined_call_operand.vmem [shape: f32[4], index: 1, kind: input, shape index: {}]
  %s2 = inlined_call_operand.hbm [shape: f32[8,512], index: 2, kind: output, shape index: {}]
  %s3 = sld [smem:[#allocation0]]
  $region26: #{tpu_custom_call.1} parent=0
    _
  %s5 = ssub.s32 1, %s3
  %s6 = scalar_select 0, %s5, %s3
  $region1: #{tpu_custom_call.1} parent=0
    #allocation2 [shape = 'u8[16384]{0}', space=vmem, size = 0x4000, scoped, tag = 'input window, operand 0, single buffered']
    #allocation3 [shape = 's32[1]{0}', space=sflag, size = 0x4, scoped, tag = 'scoped memory for tpu_custom_call.1']
    #allocation4 [shape = 's32[1]{0}', space=sflag, size = 0x4, scoped, tag = 'scoped memory for tpu_custom_call.1']
    #allocation5 [shape = 's32[1]{0}', space=sflag, size = 0x4, scoped, tag = 'scoped memory for tpu_custom_call.1']
    #allocation6 [shape = 'u8[512]{0}', space=smem, size = 0x200, scoped, tag = 'input window, operand 1, single buffered']
    #allocation7 [shape = 'u8[16384]{0}', space=vmem, size = 0x4000, scoped, tag = 'output window, operand 0, single buffered']
    %7 = vsyncpa [#allocation3], 0
    %8 = vsyncpa [#allocation5], 0
    %9 = vsyncpa [#allocation4], 0
    // Predicated region
    $region2: #{tpu_custom_call.1} parent=1 // pred_check
      _
    $region3: #{tpu_custom_call.1} parent=1 // pred_check_branch
      %11 = sbr.rel (0) target = $region5
    $region4: #{tpu_custom_call.1} parent=1 // pred_region
      %s13 = ssub.s32 512, 512
      %14 = vsyncadd [#allocation3], %s13
      %s16 = sshll.u32 [#allocation2], 4
      %s17 = int_to_ptr.vmem [resolvable:$true] %s16
      %19 = dma.hbm_to_vmem [thread:$0]  %s0, 512, %s17, [#allocation3]
    $region5: #{tpu_custom_call.1} parent=1 // pred_fallthru
      _
    // Predicated region
    $region6: #{tpu_custom_call.1} parent=1 // pred_check
      _
    $region7: #{tpu_custom_call.1} parent=1 // pred_check_branch
      %21 = sbr.rel (0) target = $region9
    $region8: #{tpu_custom_call.1} parent=1 // pred_region
      %s23 = ssub.s32 16, 16
      %24 = vsyncadd [#allocation5], %s23
      %s26 = sshll.u32 %s1, 4
      %s27 = int_to_ptr.vmem [resolvable:$true] %s26
      %29 = dma.vmem_to_smem %s27, 16, [#allocation6], [#allocation5]
    $region9: #{tpu_custom_call.1} parent=1 // pred_fallthru
      _
    // Predicated region
    $region10: #{tpu_custom_call.1} parent=1 // pred_check
      _
    $region11: #{tpu_custom_call.1} parent=1 // pred_check_branch
      %31 = sbr.rel (0) target = $region13
    $region12: #{tpu_custom_call.1} parent=1 // pred_region
      %32 = dma.done [#allocation3], 512
    $region13: #{tpu_custom_call.1} parent=1 // pred_fallthru
      _
    // Predicated region
    $region14: #{tpu_custom_call.1} parent=1 // pred_check
      _
    $region15: #{tpu_custom_call.1} parent=1 // pred_check_branch
      %34 = sbr.rel (0) target = $region17
    $region16: #{tpu_custom_call.1} parent=1 // pred_region
      %35 = dma.done [#allocation5], 16
    $region17: #{tpu_custom_call.1} parent=1 // pred_fallthru
      _
    %36 = sfence
    %s37 = sld [smem:[#allocation6]]
    %s38 = sld [smem:[#allocation6 + $0x1]]
    %s39 = sld [smem:[#allocation6 + $0x2]]
    %s40 = sld [smem:[#allocation6 + $0x3]]
    %v41 = vld [vmem:[#allocation2] sm:$0xff]
    %v42 = vld [vmem:[#allocation2 + $0x8] sm:$0xff]
    %v43 = vld [vmem:[#allocation2 + $0x10] sm:$0xff]
    %v44 = vld [vmem:[#allocation2 + $0x18] sm:$0xff]
    %v45 = vstv %s38
    %v46 = vsub.f32 %v41, %v45
    %v47 = vsub.f32 %v42, %v45
    %v48 = vsub.f32 %v43, %v45
    %v49 = vsub.f32 %v44, %v45
    %v50 = vstv %s37
    %v51 = vmul.f32 %v50, %v46
    %v52 = vmul.f32 %v50, %v47
    %v53 = vmul.f32 %v50, %v48
    %v54 = vmul.f32 %v50, %v49
    %v55 = vtanh.pop %v51
    %v56 = vtanh.pop %v52
    %v57 = vtanh.pop %v53
    %v58 = vtanh.pop %v54
    %v59 = vstv %s39
    %v60 = vadd.f32 %v59, %v55
    %v61 = vadd.f32 %v59, %v56
    %v62 = vadd.f32 %v59, %v57
    %v63 = vadd.f32 %v59, %v58
    %v64 = vstv %s40
    %v65 = vmul.f32 %v60, %v64
    %v66 = vmul.f32 %v61, %v64
    %v67 = vmul.f32 %v62, %v64
    %v68 = vmul.f32 %v63, %v64
    %69 = vst [vmem:[#allocation7] sm:$0xff] %v65
    %70 = vst [vmem:[#allocation7 + $0x8] sm:$0xff] %v66
    %71 = vst [vmem:[#allocation7 + $0x10] sm:$0xff] %v67
    %72 = vst [vmem:[#allocation7 + $0x18] sm:$0xff] %v68
    // Predicated region
    $region18: #{tpu_custom_call.1} parent=1 // pred_check
      _
    $region19: #{tpu_custom_call.1} parent=1 // pred_check_branch
      %74 = sbr.rel (0) target = $region21
    $region20: #{tpu_custom_call.1} parent=1 // pred_region
      %s76 = ssub.s32 512, 512
      %77 = vsyncadd [#allocation4], %s76
      %s79 = sshll.u32 [#allocation7], 4
      %s80 = int_to_ptr.vmem [resolvable:$true] %s79
      %82 = dma.vmem_to_hbm [thread:$0]  %s80, 512, %s2, [#allocation4]
    $region21: #{tpu_custom_call.1} parent=1 // pred_fallthru
      _
    // Predicated region
    $region22: #{tpu_custom_call.1} parent=1 // pred_check
      _
    $region23: #{tpu_custom_call.1} parent=1 // pred_check_branch
      %84 = sbr.rel (0) target = $region25
    $region24: #{tpu_custom_call.1} parent=1 // pred_region
      %85 = dma.done [#allocation4], 512
    $region25: #{tpu_custom_call.1} parent=1 // pred_fallthru
      _
    %86 = vsyncpa [#allocation3], 1
    %87 = vsyncpa [#allocation4], 1
    %88 = vsyncpa [#allocation5], 1

</llo_original>
